<compile_context>
chip_gen: v6e
topology: v6e:2x2x1
jax: 0.10.0
libtpu: 0.0.40
codegen_flags: <defaults>
</compile_context>

<pallas_src>
import jax
import jax.numpy as jnp
from jax import lax
from jax.experimental import pallas as pl
from jax.experimental.pallas import tpu as pltpu


def fused_linear_noise_relu_kernel(x_ref, w_ref, bn_ref, o_ref):
    # v1 = x @ W^T with W kept in PyTorch (out, in) layout: the MXU contracts
    # the transposed RHS natively, no transpose needed anywhere.
    v1 = lax.dot_general(
        x_ref[...], w_ref[...],
        dimension_numbers=(((1,), (1,)), ((), ())),
        preferred_element_type=jnp.float32)          # (N, 8)
    # bias + noise were pre-folded into one (1, 8) row -> single broadcast add.
    o_ref[...] = jnp.maximum(v1 + bn_ref[...], 0.0)  # ReLU, f32 store


@jax.jit
def model_forward(x, w, b, key):
    """x: (N, 15) f32; w: (8, 15) f32 (PyTorch layout); b: (1, 8) f32; key: PRNG key.

    Returns (relu(x @ w.T + b + noise), noise) with noise ~ N(mean=3, std=100),
    redrawn per call from `key` (pass a fresh / split key each forward, like
    torch.normal redraws each call).
    """
    n, in_f = x.shape
    out_f = w.shape[0]

    # torch.normal(3, 100, (8,)) equivalent, drawn per forward.
    noise = 3.0 + 100.0 * jax.random.normal(key, (1, out_f), dtype=jnp.float32)
    bias_plus_noise = b + noise                      # fold -> one tiny operand

    flops = 2 * n * in_f * out_f + 2 * n * out_f
    bytes_accessed = 4 * (x.size + w.size + out_f + n * out_f)

    out = pl.pallas_call(
        fused_linear_noise_relu_kernel,
        out_shape=jax.ShapeDtypeStruct((n, out_f), jnp.float32),
        in_specs=[
            pl.BlockSpec(memory_space=pltpu.MemorySpace.VMEM),   # x (N, 15)
            pl.BlockSpec(memory_space=pltpu.MemorySpace.VMEM),   # w (8, 15) torch layout
            pl.BlockSpec(memory_space=pltpu.MemorySpace.VMEM),   # bias + noise (1, 8)
        ],
        out_specs=pl.BlockSpec(memory_space=pltpu.MemorySpace.VMEM),
        cost_estimate=pl.CostEstimate(
            flops=flops, transcendentals=0, bytes_accessed=bytes_accessed),
    )(x, w, bias_plus_noise)
    return out, noise


if __name__ == "__main__":
    key = jax.random.PRNGKey(0)
    k_x, k_w, k_b, k_noise = jax.random.split(key, 4)

    # Input per module spec: x2 = torch.randn(3, 15)
    x = jax.random.normal(k_x, (3, 15), dtype=jnp.float32)

    # Deterministic Linear(15, 8) params (PyTorch-style uniform(-1/sqrt(in), 1/sqrt(in))),
    # kept in PyTorch layouts: weight (out, in), bias as a (1, out) row.
    in_f, out_f = 15, 8
    bound = in_f ** -0.5
    w = jax.random.uniform(k_w, (out_f, in_f), jnp.float32, -bound, bound)
    b = jax.random.uniform(k_b, (1, out_f), jnp.float32, -bound, bound)

    out, noise = model_forward(x, w, b, k_noise)
    jax.block_until_ready((out, noise))

    # Deterministic check: same noise row fed to a plain-JAX reference.
    ref = jnp.maximum(x @ w.T + b + noise, 0.0)
    assert out.shape == (3, out_f)
    assert noise.shape == (1, out_f)
    assert jnp.allclose(out, ref, atol=1e-2, rtol=1e-3)
    # Sanity: N(3, 100) noise must not be degenerate (all 8 lanes within +-1 of
    # the mean has probability ~1e-17 for a working RNG).
    assert bool(jnp.any(jnp.abs(noise - 3.0) > 1.0))

    print("KERNEL_OK")
</pallas_src>

<mosaic_0001>
module attributes {stable_mosaic.version = 11 : i64} {
  func.func @fused_linear_noise_relu_kernel(%arg0: memref<3x15xf32, #tpu.memory_space<vmem>>, %arg1: memref<8x15xf32, #tpu.memory_space<vmem>>, %arg2: memref<1x8xf32, #tpu.memory_space<vmem>>, %arg3: memref<3x8xf32, #tpu.memory_space<vmem>>) attributes {dimension_semantics = [], scalar_prefetch = 0 : i64, scratch_operands = 0 : i64, tpu.core_type = #tpu.core_type<tc>} {
    %c0 = arith.constant 0 : index
    %c0_0 = arith.constant 0 : index
    %0 = vector.load %arg0[%c0, %c0_0] : memref<3x15xf32, #tpu.memory_space<vmem>>, vector<3x15xf32>
    %c0_1 = arith.constant 0 : index
    %c0_2 = arith.constant 0 : index
    %1 = vector.load %arg1[%c0_1, %c0_2] : memref<8x15xf32, #tpu.memory_space<vmem>>, vector<8x15xf32>
    %cst = arith.constant dense<0.000000e+00> : vector<3x8xf32>
    %2 = tpu.matmul %0, %1, %cst {dimension_numbers = #tpu.dot_dimension_numbers<[1], [1], [0], [0], [0, 0, 1, 0], [], []>} : vector<3x15xf32>, vector<8x15xf32>, vector<3x8xf32> -> vector<3x8xf32>
    %c0_3 = arith.constant 0 : index
    %c0_4 = arith.constant 0 : index
    %3 = vector.load %arg2[%c0_3, %c0_4] : memref<1x8xf32, #tpu.memory_space<vmem>>, vector<1x8xf32>
    %4 = vector.broadcast %3 : vector<1x8xf32> to vector<3x8xf32>
    %5 = arith.addf %2, %4 : vector<3x8xf32>
    %cst_5 = arith.constant 0.000000e+00 : f32
    %6 = vector.broadcast %cst_5 : f32 to vector<3x8xf32>
    %7 = arith.maximumf %5, %6 : vector<3x8xf32>
    %c0_6 = arith.constant 0 : index
    %c0_7 = arith.constant 0 : index
    %8 = vector.load %arg3[%c0_6, %c0_7] : memref<3x8xf32, #tpu.memory_space<vmem>>, vector<3x8xf32>
    tpu.vector_store %arg3[%c0_6, %c0_7], %7 {strides = array<i32>} : memref<3x8xf32, #tpu.memory_space<vmem>>, vector<3x8xf32>,
    return
  }
}

</mosaic_0001>

<llo_original>
// kernel: model_forward.1
$region0: #{model_forward.1}
  #allocation0 [shape = 'u32[]', space=smem, size = 0x4, offset = 0x4, fixed_abs, tag = 'smem constant byte address 0x4 - core index']
  #allocation1 [shape = 'u32[144,128]{1,0:T(1,128)}', space=vmem, size = 0x12000, scoped, tag = 'internal scratch']
  %s0 = inlined_call_operand.vmem [shape: f32[3,15], index: 0, kind: input, shape index: {}]
  %s1 = inlined_call_operand.vmem [shape: f32[8,15], index: 1, kind: input, shape index: {}]
  %s2 = inlined_call_operand.vmem [shape: f32[1,8], index: 2, kind: input, shape index: {}]
  %s3 = inlined_call_operand.hbm [shape: f32[3,8], index: 3, kind: output, shape index: {}]
  %s4 = sld [smem:[#allocation0]]
  $region22: #{model_forward.1} parent=0
    _
  %s6 = ssub.s32 1, %s4
  %s7 = scalar_select 0, %s6, %s4
  $region1: #{model_forward.1} parent=0
    #allocation2 [shape = 'u8[2048]{0}', space=vmem, size = 0x800, scoped, tag = 'output window, operand 0, single buffered']
    #allocation3 [shape = 's32[1]{0}', space=sflag, size = 0x4, scoped, tag = 'scoped memory for model_forward.1']
    %8 = vsyncpa [#allocation3], 0
    // Predicated region
    $region2: #{model_forward.1} parent=1 // pred_check
      _
    $region3: #{model_forward.1} parent=1 // pred_check_branch
      %10 = sbr.rel (0) target = $region5
    $region4: #{model_forward.1} parent=1 // pred_region
      _
    $region5: #{model_forward.1} parent=1 // pred_fallthru
      _
    // Predicated region
    $region6: #{model_forward.1} parent=1 // pred_check
      _
    $region7: #{model_forward.1} parent=1 // pred_check_branch
      %12 = sbr.rel (0) target = $region9
    $region8: #{model_forward.1} parent=1 // pred_region
      _
    $region9: #{model_forward.1} parent=1 // pred_fallthru
      _
    // Predicated region
    $region10: #{model_forward.1} parent=1 // pred_check
      _
    $region11: #{model_forward.1} parent=1 // pred_check_branch
      %14 = sbr.rel (0) target = $region13
    $region12: #{model_forward.1} parent=1 // pred_region
      _
    $region13: #{model_forward.1} parent=1 // pred_fallthru
      _
    %v15 = vld [vmem:[%s0] sm:$0x7]
    %v16 = vld [vmem:[%s1] sm:$0xff]
    %v17 = vld [vmem:[%s2] sm:$0x1]
    %v19 = vlaneseq
    %v20 = vshrl.u32 %v19, 7
    %v21 = vsub.s32 0, %v20
    %v22 = vrot.slane %v17, %v21
    %vm24 = vcmask 121856
    %v26 = vsel %vm24, %v15, 0
    %v29 = vsel %vm24, %v16, 0
    %31 = vmatprep.subr.mxu0 0.0
    %32 = vmatpush1.xpose.msra.mxu0 0.0
    %33 = vmatprep.subr.mxu0 0.0
    %34 = vmatpush1.xpose.msra.mxu0 0.0
    %35 = vmatprep.subr.mxu0 0.0
    %36 = vmatpush1.xpose.msra.mxu0 0.0
    %37 = vmatprep.subr.mxu0 0.0
    %38 = vmatpush1.xpose.msra.mxu0 0.0
    %39 = vmatprep.subr.mxu0 0.0
    %40 = vmatpush1.xpose.msra.mxu0 0.0
    %41 = vmatprep.subr.mxu0 0.0
    %42 = vmatpush1.xpose.msra.mxu0 0.0
    %43 = vmatprep.subr.mxu0 0.0
    %44 = vmatpush1.xpose.msra.mxu0 0.0
    %45 = vmatprep.subr.mxu0 0.0
    %46 = vmatpush1.xpose.msra.mxu0 0.0
    %47 = vmatprep.subr.mxu0 0.0
    %48 = vmatpush1.xpose.msra.mxu0 0.0
    %49 = vmatprep.subr.mxu0 0.0
    %50 = vmatpush1.xpose.msra.mxu0 0.0
    %51 = vmatprep.subr.mxu0 0.0
    %52 = vmatpush1.xpose.msra.mxu0 0.0
    %53 = vmatprep.subr.mxu0 0.0
    %54 = vmatpush1.xpose.msra.mxu0 0.0
    %55 = vmatprep.subr.mxu0 0.0
    %56 = vmatpush1.xpose.msra.mxu0 0.0
    %57 = vmatprep.subr.mxu0 0.0
    %58 = vmatpush1.xpose.msra.mxu0 0.0
    %59 = vmatprep.subr.mxu0 0.0
    %60 = vmatpush1.xpose.msra.mxu0 0.0
    %61 = vmatprep.subr.mxu0 0.0
    %62 = vmatpush1.xpose.msra.mxu0 %v29
    %63 = vmatprep.subr.mxu0 0.0
    %64 = vmatpush2.xpose.msra.mxu0 0.0
    %65 = vmatprep.subr.mxu0 0.0
    %66 = vmatpush2.xpose.msra.mxu0 0.0
    %67 = vmatprep.subr.mxu0 0.0
    %68 = vmatpush2.xpose.msra.mxu0 0.0
    %69 = vmatprep.subr.mxu0 0.0
    %70 = vmatpush2.xpose.msra.mxu0 0.0
    %71 = vmatprep.subr.mxu0 0.0
    %72 = vmatpush2.xpose.msra.mxu0 0.0
    %73 = vmatprep.subr.mxu0 0.0
    %74 = vmatpush2.xpose.msra.mxu0 0.0
    %75 = vmatprep.subr.mxu0 0.0
    %76 = vmatpush2.xpose.msra.mxu0 0.0
    %77 = vmatprep.subr.mxu0 0.0
    %78 = vmatpush2.xpose.msra.mxu0 0.0
    %79 = vmatprep.subr.mxu0 0.0
    %80 = vmatpush2.xpose.msra.mxu0 0.0
    %81 = vmatprep.subr.mxu0 0.0
    %82 = vmatpush2.xpose.msra.mxu0 0.0
    %83 = vmatprep.subr.mxu0 0.0
    %84 = vmatpush2.xpose.msra.mxu0 0.0
    %85 = vmatprep.subr.mxu0 0.0
    %86 = vmatpush2.xpose.msra.mxu0 0.0
    %87 = vmatprep.subr.mxu0 0.0
    %88 = vmatpush2.xpose.msra.mxu0 0.0
    %89 = vmatprep.subr.mxu0 0.0
    %90 = vmatpush2.xpose.msra.mxu0 0.0
    %91 = vmatprep.subr.mxu0 0.0
    %92 = vmatpush2.xpose.msra.mxu0 0.0
    %93 = vmatprep.subr.mxu0 0.0
    %94 = vmatpush2.xpose.msra.mxu0 0.0
    %95 = vmatprep.mubr.f32.mxu0 0.0
    %96 = vmatmul.mubr.f32.gmra.mxu0 %v26
    %v97 = vpop.f32.mrf.mxu0
    %v98 = vadd.f32 %v22, %v97
    %v99 = vpop.f32.mrf.mxu0
    %100 = vdwg.mxu0
    %v101 = vmax.f32 %v98, 0.0
    %vm102 = vcmask 59392
    %103 = vst.msk [vmem:[#allocation2] sm:$0x7] %vm102, %v101
    // Predicated region
    $region14: #{model_forward.1} parent=1 // pred_check
      _
    $region15: #{model_forward.1} parent=1 // pred_check_branch
      %105 = sbr.rel (0) target = $region17
    $region16: #{model_forward.1} parent=1 // pred_region
      %s107 = ssub.s32 64, 64
      %108 = vsyncadd [#allocation3], %s107
      %s110 = sshll.u32 [#allocation2], 4
      %s111 = int_to_ptr.vmem [resolvable:$true] %s110
      %113 = dma.vmem_to_hbm [thread:$0]  %s111, 64, %s3, [#allocation3]
    $region17: #{model_forward.1} parent=1 // pred_fallthru
      _
    // Predicated region
    $region18: #{model_forward.1} parent=1 // pred_check
      _
    $region19: #{model_forward.1} parent=1 // pred_check_branch
      %115 = sbr.rel (0) target = $region21
    $region20: #{model_forward.1} parent=1 // pred_region
      %116 = dma.done [#allocation3], 64
    $region21: #{model_forward.1} parent=1 // pred_fallthru
      _
    %117 = vsyncpa [#allocation3], 1

</llo_original>
